<compile_context>
chip_gen: v5e
topology: v5e:2x2
jax: 0.10.0
libtpu: 0.0.40
codegen_flags: <defaults>
</compile_context>

<pallas_src>
import functools

import jax
import jax.numpy as jnp
from jax.experimental import pallas as pl
from jax.experimental.pallas import tpu as pltpu


def _fused_kernel(x_ref, wg_ref, wpp_ref, rep_ref, samp_ref, ct_ref, bp_ref,
                  emb_ref, pred_ref, *, c_pad, negative_slope):
    # One lane-dense MXU matmul for all concepts at once:
    #   (Bt, F_pad) @ (F_pad, 2*C_pad), bf16 operands, f32 accumulation.
    # The generator bias rides in via the ones column appended to x.
    z = jnp.dot(x_ref[...], wg_ref[...], preferred_element_type=jnp.float32)
    ctx = jnp.where(z >= 0.0, z, negative_slope * z)        # LeakyReLU, (Bt, 2*C_pad)
    ctx_pos = ctx[:, :c_pad]                                # 128-aligned lane slices
    ctx_neg = ctx[:, c_pad:]

    # Concept probabilities: one small f32 MXU matmul (Bt, 2*C_pad) @ (2*C_pad, n).
    logit = jnp.dot(ctx, wpp_ref[...],
                    preferred_element_type=jnp.float32) + bp_ref[0, 0]
    cp = 1.0 / (1.0 + jnp.exp(-logit))                      # sigmoid, (Bt, n)
    # Bernoulli intervention: replace predictions with ground truth where sampled.
    cp = jnp.where(samp_ref[...] > 0.5, ct_ref[...], cp)
    pred_ref[...] = cp                                      # single full-tile store

    # Broadcast each concept's prob across its emb_size lanes with an exact 0/1
    # matmul (idle MXU slot; avoids cross-lane XLU work and masked stores).
    cp_exp = jnp.dot(cp, rep_ref[...], preferred_element_type=jnp.float32)
    emb_ref[...] = ctx_pos * cp_exp + ctx_neg * (1.0 - cp_exp)   # single store


def _round_up(v, m):
    return ((v + m - 1) // m) * m


def _choose_block_b(b_pad):
    """8-aligned batch tile that divides b_pad, capped at 512 rows, and giving
    >= 2 grid steps whenever possible (so v7x's two TensorCores are both used
    via the "parallel" grid axis).  Neutral on v5e/v6e (single TC)."""
    if b_pad <= 8:
        return b_pad
    cap = min(512, b_pad // 2)
    cap -= cap % 8
    cap = max(cap, 8)
    best = 8
    for cand in range(8, cap + 1, 8):
        if b_pad % cand == 0:
            best = cand
    return best


def _nbytes(shape, itemsize):
    total = itemsize
    for s in shape:
        total *= s
    return total


def concept_embedding_forward(x, W, b, wp, bp, samples, c, *, negative_slope=0.01):
    """x: (B, F); W: (n, F, 2E); b: (n, 1, 2E); wp: (2E, 1); bp: scalar;
    samples: (B, n) bool/0-1 bernoulli draws; c: (B, n) ground-truth concepts."""
    B, F = x.shape
    n_concepts, _, two_e = W.shape
    emb_size = two_e // 2
    C = n_concepts * emb_size
    C_pad = _round_up(C, 128)            # lane-dense embedding halves
    F_pad = _round_up(F + 1, 128)        # +1 for the folded-bias ones column
    B_pad = _round_up(B, 8)
    f32 = jnp.float32

    W = W.astype(f32)
    b = b.astype(f32)
    wp = wp.astype(f32)

    # --- fused generator weights, reordered [all pos halves | all neg halves],
    #     bias folded in as an extra row, zero-padded to 128-lane multiples. ---
    W_pos = jnp.transpose(W[:, :, :emb_size], (1, 0, 2)).reshape(F, C)
    W_neg = jnp.transpose(W[:, :, emb_size:], (1, 0, 2)).reshape(F, C)
    b_pos = b[:, 0, :emb_size].reshape(1, C)
    b_neg = b[:, 0, emb_size:].reshape(1, C)

    def _pad_cols(a, width):
        return jnp.pad(a, ((0, 0), (0, width - a.shape[1])))

    gen_rows = jnp.concatenate([_pad_cols(W_pos, C_pad), _pad_cols(W_neg, C_pad)], axis=1)
    gen_bias = jnp.concatenate([_pad_cols(b_pos, C_pad), _pad_cols(b_neg, C_pad)], axis=1)
    W_gen = jnp.concatenate(
        [gen_rows, gen_bias, jnp.zeros((F_pad - F - 1, 2 * C_pad), f32)],
        axis=0).astype(jnp.bfloat16)                          # (F_pad, 2*C_pad)

    # --- x augmented with ones column (bias) + zero lane padding, batch padded. ---
    x_p = jnp.pad(x.astype(f32), ((0, B_pad - B), (0, 0)))
    x_aug = jnp.concatenate(
        [x_p, jnp.ones((B_pad, 1), f32), jnp.zeros((B_pad, F_pad - F - 1), f32)],
        axis=1).astype(jnp.bfloat16)                          # (B_pad, F_pad)

    # --- prob predictor as a block-diagonal (2*C_pad, n) weight (f32). ---
    wp_pos = wp[:emb_size, 0]
    wp_neg = wp[emb_size:, 0]
    eye_n = jnp.eye(n_concepts, dtype=f32)
    pred_top = jnp.kron(eye_n, wp_pos.reshape(emb_size, 1))   # (C, n)
    pred_bot = jnp.kron(eye_n, wp_neg.reshape(emb_size, 1))   # (C, n)
    Wp_pred = jnp.zeros((2 * C_pad, n_concepts), f32)
    Wp_pred = Wp_pred.at[:C, :].set(pred_top)
    Wp_pred = Wp_pred.at[C_pad:C_pad + C, :].set(pred_bot)

    # --- exact 0/1 replication matrix: concept prob -> its emb_size lanes. ---
    rep = jnp.zeros((n_concepts, C_pad), f32)
    rep = rep.at[:, :C].set(jnp.kron(eye_n, jnp.ones((1, emb_size), f32)))

    bp_smem = jnp.asarray(bp, f32).reshape(1, 1)
    samp_p = jnp.pad(samples.astype(f32), ((0, B_pad - B), (0, 0)))
    c_p = jnp.pad(c.astype(f32), ((0, B_pad - B), (0, 0)))

    block_b = _choose_block_b(B_pad)
    grid = (B_pad // block_b,)

    # Rough per-step VMEM footprint (double-buffered tiles); only raise the
    # scoped-VMEM cap when needed.  Cap at 64 MiB so v7x (64 MiB physical VMEM)
    # stays safe; v5e/v6e (128 MiB) never need more for these tiles.
    vmem_est = 2 * (
        _nbytes((block_b, F_pad), 2) + _nbytes((F_pad, 2 * C_pad), 2)
        + _nbytes((2 * C_pad, n_concepts), 4) + _nbytes((n_concepts, C_pad), 4)
        + 2 * _nbytes((block_b, n_concepts), 4)
        + _nbytes((block_b, C_pad), 4) + _nbytes((block_b, n_concepts), 4))
    compiler_args = {"dimension_semantics": ("parallel",)}
    if vmem_est > 24 * 1024 * 1024:
        compiler_args["vmem_limit_bytes"] = int(min(2 * vmem_est, 64 * 1024 * 1024))

    kernel = functools.partial(_fused_kernel, c_pad=C_pad,
                               negative_slope=negative_slope)

    # NOTE: weight tiles here are tiny and grid-invariant; when scaling F or
    # n_concepts, add a K (F) grid axis with a VMEM accumulator instead of
    # loading the full (F_pad, 2*C_pad) weight per step.
    emb_pad, pred_pad = pl.pallas_call(
        kernel,
        grid=grid,
        in_specs=[
            pl.BlockSpec((block_b, F_pad), lambda i: (i, 0)),            # x_aug
            pl.BlockSpec((F_pad, 2 * C_pad), lambda i: (0, 0)),          # W_gen
            pl.BlockSpec((2 * C_pad, n_concepts), lambda i: (0, 0)),     # Wp_pred
            pl.BlockSpec((n_concepts, C_pad), lambda i: (0, 0)),         # rep
            pl.BlockSpec((block_b, n_concepts), lambda i: (i, 0)),       # samples
            pl.BlockSpec((block_b, n_concepts), lambda i: (i, 0)),       # c_true
            pl.BlockSpec(memory_space=pltpu.MemorySpace.SMEM),           # bp
        ],
        out_specs=[
            pl.BlockSpec((block_b, C_pad), lambda i: (i, 0)),            # emb (flat)
            pl.BlockSpec((block_b, n_concepts), lambda i: (i, 0)),       # pred
        ],
        out_shape=(
            jax.ShapeDtypeStruct((B_pad, C_pad), jnp.float32),
            jax.ShapeDtypeStruct((B_pad, n_concepts), jnp.float32),
        ),
        compiler_params=pltpu.CompilerParams(**compiler_args),
    )(x_aug, W_gen, Wp_pred, rep, samp_p, c_p, bp_smem)

    # Strip padding; contiguous reshape to PyTorch's (B, n_concepts, emb_size).
    emb = emb_pad[:B, :C].reshape(B, n_concepts, emb_size)
    pred = pred_pad[:B, :]
    return emb, pred


def reference_forward(x, W, b, wp, bp, samples, c):
    """Pure-JAX reference mirroring the PyTorch per-concept loop."""
    n_concepts, _, two_e = W.shape
    E = two_e // 2
    embs, preds = [], []
    for i in range(n_concepts):
        z = x @ W[i] + b[i]
        ctx = jnp.where(z >= 0, z, 0.01 * z)
        cp = jax.nn.sigmoid(ctx @ wp + bp)
        cp = jnp.where(samples[:, i:i + 1], c[:, i:i + 1], cp)
        emb = ctx[:, :E] * cp + ctx[:, E:] * (1.0 - cp)
        embs.append(emb[:, None, :])
        preds.append(cp)
    return jnp.concatenate(embs, axis=1), jnp.concatenate(preds, axis=1)


if __name__ == "__main__":
    # Small deterministic example.  B=20 exercises batch padding (->24) and a
    # multi-step "parallel" grid; n*E = 64 exercises the 128-lane column pad.
    B, in_features, n_concepts, emb_size = 20, 32, 4, 16
    two_e = 2 * emb_size
    p = 0.3  # Bernoulli intervention probability

    key = jax.random.PRNGKey(0)
    kW, kb, kwp, kbp, kx, kc, ks = jax.random.split(key, 7)

    # Deterministic "synthetic checkpoint" parameters.
    W = 0.1 * jax.random.normal(kW, (n_concepts, in_features, two_e), jnp.float32)
    b = 0.1 * jax.random.normal(kb, (n_concepts, 1, two_e), jnp.float32)
    wp = 0.1 * jax.random.normal(kwp, (two_e, 1), jnp.float32)
    bp = 0.1 * jax.random.normal(kbp, (), jnp.float32)

    # Inputs.
    x = jax.random.normal(kx, (B, in_features), jnp.float32)
    c = jax.random.bernoulli(kc, 0.5, (B, n_concepts)).astype(jnp.float32)
    # One Bernoulli(p) draw per (row, concept), matching the per-loop
    # .sample((c_pred.shape[0], 1)) in the PyTorch forward.
    samples = jax.random.bernoulli(ks, p, (B, n_concepts))

    c_emb, c_pred = concept_embedding_forward(x, W, b, wp, bp, samples, c)
    jax.block_until_ready((c_emb, c_pred))

    ref_emb, ref_pred = reference_forward(x, W, b, wp, bp, samples, c)
    assert c_emb.shape == (B, n_concepts, emb_size)
    assert c_pred.shape == (B, n_concepts)
    # bf16 matmul operands (f32 accumulation) -> tolerance relaxed from 1e-5.
    assert jnp.allclose(c_emb, ref_emb, atol=2e-2, rtol=2e-2)
    assert jnp.allclose(c_pred, ref_pred, atol=2e-2, rtol=2e-2)

    print("KERNEL_OK")
</pallas_src>

<mosaic_0001>
module attributes {stable_mosaic.version = 11 : i64} {
  func.func @_fused_kernel(%arg0: i32, %arg1: memref<8x128xbf16, #tpu.memory_space<vmem>>, %arg2: memref<128x256xbf16, #tpu.memory_space<vmem>>, %arg3: memref<256x4xf32, #tpu.memory_space<vmem>>, %arg4: memref<4x128xf32, #tpu.memory_space<vmem>>, %arg5: memref<8x4xf32, #tpu.memory_space<vmem>>, %arg6: memref<8x4xf32, #tpu.memory_space<vmem>>, %arg7: memref<1x1xf32, #tpu.memory_space<smem>>, %arg8: memref<8x128xf32, #tpu.memory_space<vmem>>, %arg9: memref<8x4xf32, #tpu.memory_space<vmem>>) attributes {dimension_semantics = [#tpu.dimension_semantics<parallel>], iteration_bounds = array<i64: 3>, scalar_prefetch = 0 : i64, scratch_operands = 0 : i64, tpu.core_type = #tpu.core_type<tc>, window_params = [{transform_indices = @transform_0, window_bounds = array<i64: 8, 128>}, {pipeline_mode = #tpu.pipeline_mode<synchronous>, transform_indices = @transform_1, window_bounds = array<i64: 128, 256>}, {pipeline_mode = #tpu.pipeline_mode<synchronous>, transform_indices = @transform_2, window_bounds = array<i64: 256, 4>}, {pipeline_mode = #tpu.pipeline_mode<synchronous>, transform_indices = @transform_3, window_bounds = array<i64: 4, 128>}, {transform_indices = @transform_4, window_bounds = array<i64: 8, 4>}, {transform_indices = @transform_5, window_bounds = array<i64: 8, 4>}, {transform_indices = @transform_6, window_bounds = array<i64: 1, 1>}, {transform_indices = @transform_7, window_bounds = array<i64: 8, 128>}, {transform_indices = @transform_8, window_bounds = array<i64: 8, 4>}]} {
    %c0 = arith.constant 0 : index
    %c0_0 = arith.constant 0 : index
    %0 = vector.load %arg1[%c0, %c0_0] : memref<8x128xbf16, #tpu.memory_space<vmem>>, vector<8x128xbf16>
    %c0_1 = arith.constant 0 : index
    %c0_2 = arith.constant 0 : index
    %1 = vector.load %arg2[%c0_1, %c0_2] : memref<128x256xbf16, #tpu.memory_space<vmem>>, vector<128x256xbf16>
    %cst = arith.constant dense<0.000000e+00> : vector<8x256xf32>
    %2 = tpu.matmul %0, %1, %cst {dimension_numbers = #tpu.dot_dimension_numbers<[1], [0], [0], [1], [0, 0, 1, 1], [], []>} : vector<8x128xbf16>, vector<128x256xbf16>, vector<8x256xf32> -> vector<8x256xf32>
    %cst_3 = arith.constant 0.000000e+00 : f32
    %3 = vector.broadcast %cst_3 : f32 to vector<8x256xf32>
    %4 = arith.cmpf oge, %2, %3 : vector<8x256xf32>
    %cst_4 = arith.constant 0.00999999977 : f32
    %5 = vector.broadcast %cst_4 : f32 to vector<8x256xf32>
    %6 = arith.mulf %5, %2 : vector<8x256xf32>
    %7 = arith.select %4, %2, %6 : vector<8x256xi1>, vector<8x256xf32>
    %8 = vector.extract_strided_slice %7 {offsets = [0, 0], sizes = [8, 128], strides = [1, 1]} : vector<8x256xf32> to vector<8x128xf32>
    %9 = vector.extract_strided_slice %7 {offsets = [0, 128], sizes = [8, 128], strides = [1, 1]} : vector<8x256xf32> to vector<8x128xf32>
    %c0_5 = arith.constant 0 : index
    %c0_6 = arith.constant 0 : index
    %10 = vector.load %arg3[%c0_5, %c0_6] : memref<256x4xf32, #tpu.memory_space<vmem>>, vector<256x4xf32>
    %cst_7 = arith.constant dense<0.000000e+00> : vector<8x4xf32>
    %11 = tpu.matmul %7, %10, %cst_7 {dimension_numbers = #tpu.dot_dimension_numbers<[1], [0], [0], [1], [0, 0, 1, 1], [], []>} : vector<8x256xf32>, vector<256x4xf32>, vector<8x4xf32> -> vector<8x4xf32>
    %c0_8 = arith.constant 0 : index
    %c0_9 = arith.constant 0 : index
    %12 = memref.load %arg7[%c0_8, %c0_9] : memref<1x1xf32, #tpu.memory_space<smem>>
    %13 = vector.broadcast %12 : f32 to vector<8x4xf32>
    %14 = arith.addf %11, %13 : vector<8x4xf32>
    %cst_10 = arith.constant 0.000000e+00 : f32
    %15 = vector.broadcast %cst_10 : f32 to vector<8x4xf32>
    %16 = arith.subf %15, %14 : vector<8x4xf32>
    %17 = math.exp %16 : vector<8x4xf32>
    %cst_11 = arith.constant 1.000000e+00 : f32
    %18 = vector.broadcast %cst_11 : f32 to vector<8x4xf32>
    %19 = arith.addf %18, %17 : vector<8x4xf32>
    %cst_12 = arith.constant 1.000000e+00 : f32
    %20 = vector.broadcast %cst_12 : f32 to vector<8x4xf32>
    %21 = arith.divf %20, %19 : vector<8x4xf32>
    %c0_13 = arith.constant 0 : index
    %c0_14 = arith.constant 0 : index
    %22 = vector.load %arg5[%c0_13, %c0_14] : memref<8x4xf32, #tpu.memory_space<vmem>>, vector<8x4xf32>
    %cst_15 = arith.constant 5.000000e-01 : f32
    %23 = vector.broadcast %cst_15 : f32 to vector<8x4xf32>
    %24 = arith.cmpf ogt, %22, %23 : vector<8x4xf32>
    %c0_16 = arith.constant 0 : index
    %c0_17 = arith.constant 0 : index
    %25 = vector.load %arg6[%c0_16, %c0_17] : memref<8x4xf32, #tpu.memory_space<vmem>>, vector<8x4xf32>
    %26 = arith.select %24, %25, %21 : vector<8x4xi1>, vector<8x4xf32>
    %c0_18 = arith.constant 0 : index
    %c0_19 = arith.constant 0 : index
    %27 = vector.load %arg9[%c0_18, %c0_19] : memref<8x4xf32, #tpu.memory_space<vmem>>, vector<8x4xf32>
    tpu.vector_store %arg9[%c0_18, %c0_19], %26 {strides = array<i32>} : memref<8x4xf32, #tpu.memory_space<vmem>>, vector<8x4xf32>,
    %c0_20 = arith.constant 0 : index
    %c0_21 = arith.constant 0 : index
    %28 = vector.load %arg4[%c0_20, %c0_21] : memref<4x128xf32, #tpu.memory_space<vmem>>, vector<4x128xf32>
    %cst_22 = arith.constant dense<0.000000e+00> : vector<8x128xf32>
    %29 = tpu.matmul %26, %28, %cst_22 {dimension_numbers = #tpu.dot_dimension_numbers<[1], [0], [0], [1], [0, 0, 1, 1], [], []>} : vector<8x4xf32>, vector<4x128xf32>, vector<8x128xf32> -> vector<8x128xf32>
    %30 = arith.mulf %8, %29 : vector<8x128xf32>
    %cst_23 = arith.constant 1.000000e+00 : f32
    %31 = vector.broadcast %cst_23 : f32 to vector<8x128xf32>
    %32 = arith.subf %31, %29 : vector<8x128xf32>
    %33 = arith.mulf %9, %32 : vector<8x128xf32>
    %34 = arith.addf %30, %33 : vector<8x128xf32>
    %c0_24 = arith.constant 0 : index
    %c0_25 = arith.constant 0 : index
    %35 = vector.load %arg8[%c0_24, %c0_25] : memref<8x128xf32, #tpu.memory_space<vmem>>, vector<8x128xf32>
    tpu.vector_store %arg8[%c0_24, %c0_25], %34 {strides = array<i32>} : memref<8x128xf32, #tpu.memory_space<vmem>>, vector<8x128xf32>,
    return
  }
  func.func @transform_0(%arg0: i32) -> (i32, i32) {
    %c0_i32 = arith.constant 0 : i32
    %c0_i32_0 = arith.constant 0 : i32
    return %arg0, %c0_i32 : i32, i32
  }
  func.func @transform_1(%arg0: i32) -> (i32, i32) {
    %c0_i32 = arith.constant 0 : i32
    %c0_i32_0 = arith.constant 0 : i32
    %c0_i32_1 = arith.constant 0 : i32
    return %c0_i32, %c0_i32_0 : i32, i32
  }
  func.func @transform_2(%arg0: i32) -> (i32, i32) {
    %c0_i32 = arith.constant 0 : i32
    %c0_i32_0 = arith.constant 0 : i32
    %c0_i32_1 = arith.constant 0 : i32
    return %c0_i32, %c0_i32_0 : i32, i32
  }
  func.func @transform_3(%arg0: i32) -> (i32, i32) {
    %c0_i32 = arith.constant 0 : i32
    %c0_i32_0 = arith.constant 0 : i32
    %c0_i32_1 = arith.constant 0 : i32
    return %c0_i32, %c0_i32_0 : i32, i32
  }
  func.func @transform_4(%arg0: i32) -> (i32, i32) {
    %c0_i32 = arith.constant 0 : i32
    %c0_i32_0 = arith.constant 0 : i32
    return %arg0, %c0_i32 : i32, i32
  }
  func.func @transform_5(%arg0: i32) -> (i32, i32) {
    %c0_i32 = arith.constant 0 : i32
    %c0_i32_0 = arith.constant 0 : i32
    return %arg0, %c0_i32 : i32, i32
  }
  func.func @transform_6(%arg0: i32) -> (i32, i32) {
    %c0_i32 = arith.constant 0 : i32
    %c0_i32_0 = arith.constant 0 : i32
    %c0_i32_1 = arith.constant 0 : i32
    return %c0_i32, %c0_i32_0 : i32, i32
  }
  func.func @transform_7(%arg0: i32) -> (i32, i32) {
    %c0_i32 = arith.constant 0 : i32
    %c0_i32_0 = arith.constant 0 : i32
    return %arg0, %c0_i32 : i32, i32
  }
  func.func @transform_8(%arg0: i32) -> (i32, i32) {
    %c0_i32 = arith.constant 0 : i32
    %c0_i32_0 = arith.constant 0 : i32
    return %arg0, %c0_i32 : i32, i32
  }
}

</mosaic_0001>

<llo_original>
// kernel: tpu_custom_call.1
$region0: #{tpu_custom_call.1}
  #allocation0 [shape = 'u32[]', space=smem, size = 0x4, offset = 0x4, fixed_abs, tag = 'smem constant byte address 0x4 - core index']
  #allocation1 [shape = 'u32[72,128]{1,0:T(1,128)}', space=vmem, size = 0x9000, scoped, tag = 'internal scratch']
  #allocation2 [shape = 'f32[1,1]{1,0:T(1,128)S(6)}', space=smem, size = 0x200, scoped, tag = 'scoped memory for tpu_custom_call.1']
  %s0 = inlined_call_operand.vmem [shape: bf16[24,128], index: 0, kind: input, shape index: {}]
  %s1 = inlined_call_operand.vmem [shape: bf16[128,256], index: 1, kind: input, shape index: {}]
  %s2 = inlined_call_operand.vmem [shape: f32[256,4], index: 2, kind: input, shape index: {}]
  %s3 = inlined_call_operand.vmem [shape: f32[4,128], index: 3, kind: input, shape index: {}]
  %s4 = inlined_call_operand.vmem [shape: f32[24,4], index: 4, kind: input, shape index: {}]
  %s5 = inlined_call_operand.vmem [shape: f32[24,4], index: 5, kind: input, shape index: {}]
  %s6 = inlined_call_operand.<no memory space> [shape: f32[1,1], index: 6, kind: input, shape index: {}]
  %s7 = inlined_call_operand.hbm [shape: f32[24,128], index: 7, kind: output, shape index: {0}]
  %s8 = inlined_call_operand.vmem [shape: f32[24,4], index: 8, kind: output, shape index: {1}]
  %9 = xla_tuple %s7, %s8
  %s10 = sld [smem:[#allocation0]]
  $region69: #{tpu_custom_call.1} parent=0
    _
  %s12 = ssub.s32 1, %s10
  %s13 = scalar_select 0, %s12, %s10
  %14 = sst [smem:[#allocation2]] %s6
  $region1: #{tpu_custom_call.1} parent=0
    #allocation3 [shape = 'u8[8192]{0}', space=vmem, size = 0x2000, scoped, tag = 'output window, operand 0']
    #allocation4 [shape = 's32[2]{0}', space=sflag, size = 0x8, scoped, tag = 'scoped memory for tpu_custom_call.1']
    %15 = vsyncpa [#allocation4], 0
    %s16 = scalar_lea.sflag [#allocation4], 1
    %17 = vsyncpa %s16, 0
    loop: start=0, step=1, limit=5
    $region2: #{tpu_custom_call.1} parent=1 // loop_pre_header
      _
    $region3: #{tpu_custom_call.1} parent=1 // loop_header
      %s19 = sphi 0, %s23
      %p20 = scmp.ge.s32.totalorder %s19, 5
      %s29 = sphi 0, %s31
      %s32 = sphi 0, %s29
      %s33 = sphi 0, %s32
      %s49 = sphi 0, %s33
      %s53 = sphi 0, %s53
      %s55 = sphi 0, %s53
      %s56 = sphi 0, %s55
      %s70 = sphi 0, %s56
      %s74 = sphi 0, %s74
      %s76 = sphi 0, %s74
      %s77 = sphi 0, %s76
      %s91 = sphi 0, %s77
      %s95 = sphi 0, %s95
      %s97 = sphi 0, %s95
      %s98 = sphi 0, %s97
      %s112 = sphi 0, %s98
      %s118 = sphi 0, %s120
      %s121 = sphi 0, %s118
      %s122 = sphi 0, %s121
      %s138 = sphi 0, %s122
      %s144 = sphi 0, %s146
      %s147 = sphi 0, %s144
      %s148 = sphi 0, %s147
      %s164 = sphi 0, %s148
      %s168 = sphi 0, %s168
      %s170 = sphi 0, %s168
      %s171 = sphi 0, %s170
      %s185 = sphi 0, %s171
      %s191 = sphi 0, %s193
      %s194 = sphi 0, %s191
      %s195 = sphi 0, %s194
      %s211 = sphi 0, %s195
      %s217 = sphi 0, %s219
      %s220 = sphi 0, %s217
      %s221 = sphi 0, %s220
      %s237 = sphi 0, %s221
    $region4: #{tpu_custom_call.1} parent=1 // loop_header_branch
      %22 = sbr.rel (%p20) target = $region8
    $region5: #{tpu_custom_call.1} parent=1 // loop_body
      %s24 = ssub.s32 %s19, 1
      %s25 = ssub.s32 %s19, 2
      %s26 = sadd.s32 %s19, 1
      %s27 = ssub.s32 %s19, %s26
      %p28 = scmp.eq.s32.totalorder %s27, 0
      %s30 = sadd.s32 %s29, 1
      %s31 = scalar_select %p28, %s29, %s30
      %p34 = pneg %p28
      %p35 = scmp.eq.s32.totalorder %s19, 2
      %p36 = por %p34, %p35
      %p37 = scmp.ne.s32.totalorder %s29, %s32
      %p38 = scmp.eq.s32.totalorder %s19, 0
      %p39 = por %p37, %p38
      %p40 = scmp.ne.s32.totalorder %s29, %s32
      %p41 = scmp.eq.s32.totalorder %s24, 2
      %p42 = por %p40, %p41
      %p43 = scmp.ne.s32.totalorder %s32, %s33
      %p44 = scmp.eq.s32.totalorder %s24, 0
      %p45 = por %p43, %p44
      %p46 = scmp.ne.s32.totalorder %s32, %s33
      %p47 = scmp.eq.s32.totalorder %s25, 2
      %p48 = por %p46, %p47
      %p50 = scmp.ne.s32.totalorder %s33, %s49
      %p51 = scmp.eq.s32.totalorder %s25, 0
      %p52 = por %p50, %p51
      %s54 = sadd.s32 %s53, 1
      %p57 = scmp.eq.s32.totalorder %s19, 2
      %p58 = scmp.ne.s32.totalorder %s53, %s55
      %p59 = scmp.eq.s32.totalorder %s19, 0
      %p60 = por %p58, %p59
      %p61 = scmp.ne.s32.totalorder %s53, %s55
      %p62 = scmp.eq.s32.totalorder %s24, 2
      %p63 = por %p61, %p62
      %p64 = scmp.ne.s32.totalorder %s55, %s56
      %p65 = scmp.eq.s32.totalorder %s24, 0
      %p66 = por %p64, %p65
      %p67 = scmp.ne.s32.totalorder %s55, %s56
      %p68 = scmp.eq.s32.totalorder %s25, 2
      %p69 = por %p67, %p68
      %p71 = scmp.ne.s32.totalorder %s56, %s70
      %p72 = scmp.eq.s32.totalorder %s25, 0
      %p73 = por %p71, %p72
      %s75 = sadd.s32 %s74, 1
      %p78 = scmp.eq.s32.totalorder %s19, 2
      %p79 = scmp.ne.s32.totalorder %s74, %s76
      %p80 = scmp.eq.s32.totalorder %s19, 0
      %p81 = por %p79, %p80
      %p82 = scmp.ne.s32.totalorder %s74, %s76
      %p83 = scmp.eq.s32.totalorder %s24, 2
      %p84 = por %p82, %p83
      %p85 = scmp.ne.s32.totalorder %s76, %s77
      %p86 = scmp.eq.s32.totalorder %s24, 0
      %p87 = por %p85, %p86
      %p88 = scmp.ne.s32.totalorder %s76, %s77
      %p89 = scmp.eq.s32.totalorder %s25, 2
      %p90 = por %p88, %p89
      %p92 = scmp.ne.s32.totalorder %s77, %s91
      %p93 = scmp.eq.s32.totalorder %s25, 0
      %p94 = por %p92, %p93
      %s96 = sadd.s32 %s95, 1
      %p99 = scmp.eq.s32.totalorder %s19, 2
      %p100 = scmp.ne.s32.totalorder %s95, %s97
      %p101 = scmp.eq.s32.totalorder %s19, 0
      %p102 = por %p100, %p101
      %p103 = scmp.ne.s32.totalorder %s95, %s97
      %p104 = scmp.eq.s32.totalorder %s24, 2
      %p105 = por %p103, %p104
      %p106 = scmp.ne.s32.totalorder %s97, %s98
      %p107 = scmp.eq.s32.totalorder %s24, 0
      %p108 = por %p106, %p107
      %p109 = scmp.ne.s32.totalorder %s97, %s98
      %p110 = scmp.eq.s32.totalorder %s25, 2
      %p111 = por %p109, %p110
      %p113 = scmp.ne.s32.totalorder %s98, %s112
      %p114 = scmp.eq.s32.totalorder %s25, 0
      %p115 = por %p113, %p114
      %s116 = ssub.s32 %s19, %s26
      %p117 = scmp.eq.s32.totalorder %s116, 0
      %s119 = sadd.s32 %s118, 1
      %s120 = scalar_select %p117, %s118, %s119
      %p123 = pneg %p117
      %p124 = scmp.eq.s32.totalorder %s19, 2
      %p125 = por %p123, %p124
      %p126 = scmp.ne.s32.totalorder %s118, %s121
      %p127 = scmp.eq.s32.totalorder %s19, 0
      %p128 = por %p126, %p127
      %p129 = scmp.ne.s32.totalorder %s118, %s121
      %p130 = scmp.eq.s32.totalorder %s24, 2
      %p131 = por %p129, %p130
      %p132 = scmp.ne.s32.totalorder %s121, %s122
      %p133 = scmp.eq.s32.totalorder %s24, 0
      %p134 = por %p132, %p133
      %p135 = scmp.ne.s32.totalorder %s121, %s122
      %p136 = scmp.eq.s32.totalorder %s25, 2
      %p137 = por %p135, %p136
      %p139 = scmp.ne.s32.totalorder %s122, %s138
      %p140 = scmp.eq.s32.totalorder %s25, 0
      %p141 = por %p139, %p140
      %s142 = ssub.s32 %s19, %s26
      %p143 = scmp.eq.s32.totalorder %s142, 0
      %s145 = sadd.s32 %s144, 1
      %s146 = scalar_select %p143, %s144, %s145
      %p149 = pneg %p143
      %p150 = scmp.eq.s32.totalorder %s19, 2
      %p151 = por %p149, %p150
      %p152 = scmp.ne.s32.totalorder %s144, %s147
      %p153 = scmp.eq.s32.totalorder %s19, 0
      %p154 = por %p152, %p153
      %p155 = scmp.ne.s32.totalorder %s144, %s147
      %p156 = scmp.eq.s32.totalorder %s24, 2
      %p157 = por %p155, %p156
      %p158 = scmp.ne.s32.totalorder %s147, %s148
      %p159 = scmp.eq.s32.totalorder %s24, 0
      %p160 = por %p158, %p159
      %p161 = scmp.ne.s32.totalorder %s147, %s148
      %p162 = scmp.eq.s32.totalorder %s25, 2
      %p163 = por %p161, %p162
      %p165 = scmp.ne.s32.totalorder %s148, %s164
      %p166 = scmp.eq.s32.totalorder %s25, 0
      %p167 = por %p165, %p166
      %s169 = sadd.s32 %s168, 1
      %p172 = scmp.eq.s32.totalorder %s19, 2
      %p173 = scmp.ne.s32.totalorder %s168, %s170
      %p174 = scmp.eq.s32.totalorder %s19, 0
      %p175 = por %p173, %p174
      %p176 = scmp.ne.s32.totalorder %s168, %s170
      %p177 = scmp.eq.s32.totalorder %s24, 2
      %p178 = por %p176, %p177
      %p179 = scmp.ne.s32.totalorder %s170, %s171
      %p180 = scmp.eq.s32.totalorder %s24, 0
      %p181 = por %p179, %p180
      %p182 = scmp.ne.s32.totalorder %s170, %s171
      %p183 = scmp.eq.s32.totalorder %s25, 2
      %p184 = por %p182, %p183
      %p186 = scmp.ne.s32.totalorder %s171, %s185
      %p187 = scmp.eq.s32.totalorder %s25, 0
      %p188 = por %p186, %p187
      %s189 = ssub.s32 %s19, %s26
      %p190 = scmp.eq.s32.totalorder %s189, 0
      %s192 = sadd.s32 %s191, 1
      %s193 = scalar_select %p190, %s191, %s192
      %p196 = pneg %p190
      %p197 = scmp.eq.s32.totalorder %s19, 2
      %p198 = por %p196, %p197
      %p199 = scmp.ne.s32.totalorder %s191, %s194
      %p200 = scmp.eq.s32.totalorder %s19, 0
      %p201 = por %p199, %p200
      %p202 = scmp.ne.s32.totalorder %s191, %s194
      %p203 = scmp.eq.s32.totalorder %s24, 2
      %p204 = por %p202, %p203
      %p205 = scmp.ne.s32.totalorder %s194, %s195
      %p206 = scmp.eq.s32.totalorder %s24, 0
      %p207 = por %p205, %p206
      %p208 = scmp.ne.s32.totalorder %s194, %s195
      %p209 = scmp.eq.s32.totalorder %s25, 2
      %p210 = por %p208, %p209
      %p212 = scmp.ne.s32.totalorder %s195, %s211
      %p213 = scmp.eq.s32.totalorder %s25, 0
      %p214 = por %p212, %p213
      %s215 = ssub.s32 %s19, %s26
      %p216 = scmp.eq.s32.totalorder %s215, 0
      %s218 = sadd.s32 %s217, 1
      %s219 = scalar_select %p216, %s217, %s218
      %p222 = pneg %p216
      %p223 = scmp.eq.s32.totalorder %s19, 2
      %p224 = por %p222, %p223
      %p225 = scmp.ne.s32.totalorder %s217, %s220
      %p226 = scmp.eq.s32.totalorder %s19, 0
      %p227 = por %p225, %p226
      %p228 = scmp.ne.s32.totalorder %s217, %s220
      %p229 = scmp.eq.s32.totalorder %s24, 2
      %p230 = por %p228, %p229
      %p231 = scmp.ne.s32.totalorder %s220, %s221
      %p232 = scmp.eq.s32.totalorder %s24, 0
      %p233 = por %p231, %p232
      %p234 = scmp.ne.s32.totalorder %s220, %s221
      %p235 = scmp.eq.s32.totalorder %s25, 2
      %p236 = por %p234, %p235
      %p238 = scmp.ne.s32.totalorder %s221, %s237
      %p239 = scmp.eq.s32.totalorder %s25, 0
      %p240 = por %p238, %p239
      %p241 = scmp.le.s32.totalorder 1, %s19
      %p242 = scmp.lt.s32.totalorder %s19, 4
      %p243 = pnand %p241, %p242
      %p244 = pneg %p243
      // Predicated region
      $region9: #{tpu_custom_call.1} parent=5 // pred_check
        _
      $region10: #{tpu_custom_call.1} parent=5 // pred_check_branch
        %246 = sbr.rel (%p243) target = $region12
      $region11: #{tpu_custom_call.1} parent=5 // pred_region
        %s247 = ssub.s32 %s19, 1
        // Predicated region
        $region13: #{tpu_custom_call.1} parent=11 // pred_check
          %p248 = pneg %p66
        $region14: #{tpu_custom_call.1} parent=11 // pred_check_branch
          %250 = sbr.rel (%p248) target = $region16
        $region15: #{tpu_custom_call.1} parent=11 // pred_region
          _
        $region16: #{tpu_custom_call.1} parent=11 // pred_fallthru
          _
        // Predicated region
        $region17: #{tpu_custom_call.1} parent=11 // pred_check
          %p251 = pneg %p87
        $region18: #{tpu_custom_call.1} parent=11 // pred_check_branch
          %253 = sbr.rel (%p251) target = $region20
        $region19: #{tpu_custom_call.1} parent=11 // pred_region
          _
        $region20: #{tpu_custom_call.1} parent=11 // pred_fallthru
          _
        // Predicated region
        $region21: #{tpu_custom_call.1} parent=11 // pred_check
          %p254 = pneg %p108
        $region22: #{tpu_custom_call.1} parent=11 // pred_check_branch
          %256 = sbr.rel (%p254) target = $region24
        $region23: #{tpu_custom_call.1} parent=11 // pred_region
          _
        $region24: #{tpu_custom_call.1} parent=11 // pred_fallthru
          _
        // Predicated region
        $region25: #{tpu_custom_call.1} parent=11 // pred_check
          %p257 = pneg %p181
        $region26: #{tpu_custom_call.1} parent=11 // pred_check_branch
          %259 = sbr.rel (%p257) target = $region28
        $region27: #{tpu_custom_call.1} parent=11 // pred_region
          _
        $region28: #{tpu_custom_call.1} parent=11 // pred_fallthru
          _
      $region12: #{tpu_custom_call.1} parent=5 // pred_fallthru
        _
      %p260 = scmp.lt.s32.totalorder %s19, 3
      // Predicated region
      $region29: #{tpu_custom_call.1} parent=5 // pred_check
        %p261 = pneg %p260
      $region30: #{tpu_custom_call.1} parent=5 // pred_check_branch
        %263 = sbr.rel (%p261) target = $region32
      $region31: #{tpu_custom_call.1} parent=5 // pred_region
        // Predicated region
        $region33: #{tpu_custom_call.1} parent=31 // pred_check
          %p264 = pneg %p39
        $region34: #{tpu_custom_call.1} parent=31 // pred_check_branch
          %266 = sbr.rel (%p264) target = $region36
        $region35: #{tpu_custom_call.1} parent=31 // pred_region
          %p267 = scmp.lt.s32.totalorder %s19, 2
          %s268 = scalar_select %p267, %s19, 2
          %s269 = smul.addr %s268, 4
          %s270 = scalar_lea.vmem %s0, %s269
        $region36: #{tpu_custom_call.1} parent=31 // pred_fallthru
          _
        // Predicated region
        $region37: #{tpu_custom_call.1} parent=31 // pred_check
          %p271 = pneg %p128
        $region38: #{tpu_custom_call.1} parent=31 // pred_check_branch
          %273 = sbr.rel (%p271) target = $region40
        $region39: #{tpu_custom_call.1} parent=31 // pred_region
          %p274 = scmp.lt.s32.totalorder %s19, 2
          %s275 = scalar_select %p274, %s19, 2
          %s276 = smul.addr %s275, 8
          %s277 = scalar_lea.vmem %s4, %s276
        $region40: #{tpu_custom_call.1} parent=31 // pred_fallthru
          _
        // Predicated region
        $region41: #{tpu_custom_call.1} parent=31 // pred_check
          %p278 = pneg %p154
        $region42: #{tpu_custom_call.1} parent=31 // pred_check_branch
          %280 = sbr.rel (%p278) target = $region44
        $region43: #{tpu_custom_call.1} parent=31 // pred_region
          %p281 = scmp.lt.s32.totalorder %s19, 2
          %s282 = scalar_select %p281, %s19, 2
          %s283 = smul.addr %s282, 8
          %s284 = scalar_lea.vmem %s5, %s283
        $region44: #{tpu_custom_call.1} parent=31 // pred_fallthru
          _
      $region32: #{tpu_custom_call.1} parent=5 // pred_fallthru
        _
      %p285 = scmp.le.s32.totalorder 1, %s19
      %p286 = scmp.lt.s32.totalorder %s19, 4
      %p287 = pnand %p285, %p286
      %p288 = pneg %p287
      // Predicated region
      $region45: #{tpu_custom_call.1} parent=5 // pred_check
        _
      $region46: #{tpu_custom_call.1} parent=5 // pred_check_branch
        %290 = sbr.rel (%p287) target = $region48
      $region47: #{tpu_custom_call.1} parent=5 // pred_region
        %s291 = ssub.s32 %s19, 1
        %p292 = scmp.lt.s32.totalorder %s24, 2
        %s293 = scalar_select %p292, %s24, 2
        %s294 = smul.addr %s293, 4
        %s295 = scalar_lea.vmem %s0, %s294
        %p296 = pneg %p45
        %p297 = pneg %p42
        %p298 = pneg %p66
        %p299 = pneg %p63
        %p300 = pneg %p87
        %p301 = pneg %p84
        %p302 = pneg %p108
        %p303 = pneg %p105
        %p304 = scmp.lt.s32.totalorder %s24, 2
        %s305 = scalar_select %p304, %s24, 2
        %s306 = smul.addr %s305, 8
        %s307 = scalar_lea.vmem %s4, %s306
        %p308 = pneg %p134
        %p309 = pneg %p131
        %p310 = scmp.lt.s32.totalorder %s24, 2
        %s311 = scalar_select %p310, %s24, 2
        %s312 = smul.addr %s311, 8
        %s313 = scalar_lea.vmem %s5, %s312
        %p314 = pneg %p160
        %p315 = pneg %p157
        %p316 = pneg %p181
        %p317 = pneg %p178
        %p318 = pneg %p207
        %p319 = pneg %p204
        %s320 = sand.u32 %s194, 1
        %s321 = scalar_lea.sflag [#allocation4], %s320
        %s322 = sand.u32 %s194, 1
        %s323 = smul.addr %s322, 8
        %s324 = scalar_lea.vmem [#allocation3], %s323
        %p325 = pneg %p233
        %p326 = pneg %p230
        %p327 = scmp.lt.s32.totalorder %s24, 2
        %s328 = scalar_select %p327, %s24, 2
        %s329 = smul.addr %s328, 8
        %s330 = scalar_lea.vmem %s8, %s329
        %p331 = scmp.lt.s32.totalorder %s24, 2
        %s332 = scalar_select %p331, %s24, 2
        %s333 = smul.addr %s332, 4
        %s334 = scalar_lea.vmem %s0, %s333
        %p335 = scmp.lt.s32.totalorder %s24, 2
        %s336 = scalar_select %p335, %s24, 2
        %s337 = smul.addr %s336, 8
        %s338 = scalar_lea.vmem %s4, %s337
        %p339 = scmp.lt.s32.totalorder %s24, 2
        %s340 = scalar_select %p339, %s24, 2
        %s341 = smul.addr %s340, 8
        %s342 = scalar_lea.vmem %s5, %s341
        %p343 = scmp.lt.s32.totalorder %s24, 2
        %s344 = scalar_select %p343, %s24, 2
        %s345 = smul.addr %s344, 8
        %s346 = scalar_lea.vmem %s8, %s345
        %v347 = vld [vmem:[%s334] sm:$0xf]
        %v348 = vld [vmem:[%s1] sm:$0xff]
        %v349 = vld [vmem:[%s1 + $0x8] sm:$0xff]
        %v350 = vld [vmem:[%s1 + $0x10] sm:$0xff]
        %v351 = vld [vmem:[%s1 + $0x18] sm:$0xff]
        %v352 = vld [vmem:[%s1 + $0x20] sm:$0xff]
        %v353 = vld [vmem:[%s1 + $0x28] sm:$0xff]
        %v354 = vld [vmem:[%s1 + $0x30] sm:$0xff]
        %v355 = vld [vmem:[%s1 + $0x38] sm:$0xff]
        %v356 = vld [vmem:[%s1 + $0x40] sm:$0xff]
        %v357 = vld [vmem:[%s1 + $0x48] sm:$0xff]
        %v358 = vld [vmem:[%s1 + $0x50] sm:$0xff]
        %v359 = vld [vmem:[%s1 + $0x58] sm:$0xff]
        %v360 = vld [vmem:[%s1 + $0x60] sm:$0xff]
        %v361 = vld [vmem:[%s1 + $0x68] sm:$0xff]
        %v362 = vld [vmem:[%s1 + $0x70] sm:$0xff]
        %v363 = vld [vmem:[%s1 + $0x78] sm:$0xff]
        %v380 = vunpack.c.l.b16 %v348
        %v381 = vunpack.c.h.b16 %v348
        %v382 = vunpack.c.l.b16 %v349
        %v383 = vunpack.c.h.b16 %v349
        %v384 = vunpack.c.l.b16 %v350
        %v385 = vunpack.c.h.b16 %v350
        %v386 = vunpack.c.l.b16 %v351
        %v387 = vunpack.c.h.b16 %v351
        %v388 = vunpack.c.l.b16 %v352
        %v389 = vunpack.c.h.b16 %v352
        %v390 = vunpack.c.l.b16 %v353
        %v391 = vunpack.c.h.b16 %v353
        %v392 = vunpack.c.l.b16 %v354
        %v393 = vunpack.c.h.b16 %v354
        %v394 = vunpack.c.l.b16 %v355
        %v395 = vunpack.c.h.b16 %v355
        %v396 = vunpack.c.l.b16 %v356
        %v397 = vunpack.c.h.b16 %v356
        %v398 = vunpack.c.l.b16 %v357
        %v399 = vunpack.c.h.b16 %v357
        %v400 = vunpack.c.l.b16 %v358
        %v401 = vunpack.c.h.b16 %v358
        %v402 = vunpack.c.l.b16 %v359
        %v403 = vunpack.c.h.b16 %v359
        %v404 = vunpack.c.l.b16 %v360
        %v405 = vunpack.c.h.b16 %v360
        %v406 = vunpack.c.l.b16 %v361
        %v407 = vunpack.c.h.b16 %v361
        %v408 = vunpack.c.l.b16 %v362
        %v409 = vunpack.c.h.b16 %v362
        %v410 = vunpack.c.l.b16 %v363
        %v411 = vunpack.c.h.b16 %v363
        %v412 = vpack.c.b16 %v382, %v380
        %v413 = vpack.c.b16 %v383, %v381
        %v414 = vpack.c.b16 %v386, %v384
        %v415 = vpack.c.b16 %v387, %v385
        %v416 = vpack.c.b16 %v390, %v388
        %v417 = vpack.c.b16 %v391, %v389
        %v418 = vpack.c.b16 %v394, %v392
        %v419 = vpack.c.b16 %v395, %v393
        %v420 = vpack.c.b16 %v398, %v396
        %v421 = vpack.c.b16 %v399, %v397
        %v422 = vpack.c.b16 %v402, %v400
        %v423 = vpack.c.b16 %v403, %v401
        %v424 = vpack.c.b16 %v406, %v404
        %v425 = vpack.c.b16 %v407, %v405
        %v426 = vpack.c.b16 %v410, %v408
        %v427 = vpack.c.b16 %v411, %v409
        %444 = vmatpush.bf16.msra.mxu0 %v426
        %445 = vmatpush.bf16.msra.mxu0 %v424
        %446 = vmatpush.bf16.msra.mxu0 %v422
        %447 = vmatpush.bf16.msra.mxu0 %v420
        %448 = vmatpush.bf16.msra.mxu0 %v418
        %449 = vmatpush.bf16.msra.mxu0 %v416
        %450 = vmatpush.bf16.msra.mxu0 %v414
        %451 = vmatpush.bf16.msra.mxu0 %v412
        %452 = vmatmul.bf16.gmra.mxu0 %v347
        %v453 = vpop.f32.mrf.mxu0
        %v454 = vadd.f32 0.0, %v453
        %v455 = vpop.f32.mrf.mxu0
        %456 = vdwg.mxu0
        %457 = vmatpush.bf16.msra.mxu0 %v427
        %458 = vmatpush.bf16.msra.mxu0 %v425
        %459 = vmatpush.bf16.msra.mxu0 %v423
        %460 = vmatpush.bf16.msra.mxu0 %v421
        %461 = vmatpush.bf16.msra.mxu0 %v419
        %462 = vmatpush.bf16.msra.mxu0 %v417
        %463 = vmatpush.bf16.msra.mxu0 %v415
        %464 = vmatpush.bf16.msra.mxu0 %v413
        %465 = vmatmul.bf16.gmra.mxu0 %v347
        %v466 = vpop.f32.mrf.mxu0
        %v467 = vadd.f32 0.0, %v466
        %v468 = vpop.f32.mrf.mxu0
        %469 = vdwg.mxu0
        %vm470 = vcmp.ge.f32.partialorder %v454, 0.0
        %vm471 = vcmp.ge.f32.partialorder %v467, 0.0
        %v472 = vmul.f32 %v454, 0.01
        %v473 = vmul.f32 %v467, 0.01
        %v474 = vsel %vm470, %v454, %v472
        %v475 = vsel %vm471, %v467, %v473
        %v476 = vld [vmem:[%s2] sm:$0xff]
        %v477 = vld [vmem:[%s2 + $0x8] sm:$0xff]
        %v478 = vld [vmem:[%s2 + $0x10] sm:$0xff]
        %v479 = vld [vmem:[%s2 + $0x18] sm:$0xff]
        %v480 = vld [vmem:[%s2 + $0x20] sm:$0xff]
        %v481 = vld [vmem:[%s2 + $0x28] sm:$0xff]
        %v482 = vld [vmem:[%s2 + $0x30] sm:$0xff]
        %v483 = vld [vmem:[%s2 + $0x38] sm:$0xff]
        %v484 = vld [vmem:[%s2 + $0x40] sm:$0xff]
        %v485 = vld [vmem:[%s2 + $0x48] sm:$0xff]
        %v486 = vld [vmem:[%s2 + $0x50] sm:$0xff]
        %v487 = vld [vmem:[%s2 + $0x58] sm:$0xff]
        %v488 = vld [vmem:[%s2 + $0x60] sm:$0xff]
        %v489 = vld [vmem:[%s2 + $0x68] sm:$0xff]
        %v490 = vld [vmem:[%s2 + $0x70] sm:$0xff]
        %v491 = vld [vmem:[%s2 + $0x78] sm:$0xff]
        %v492 = vld [vmem:[%s2 + $0x80] sm:$0xff]
        %v493 = vld [vmem:[%s2 + $0x88] sm:$0xff]
        %v494 = vld [vmem:[%s2 + $0x90] sm:$0xff]
        %v495 = vld [vmem:[%s2 + $0x98] sm:$0xff]
        %v496 = vld [vmem:[%s2 + $0xa0] sm:$0xff]
        %v497 = vld [vmem:[%s2 + $0xa8] sm:$0xff]
        %v498 = vld [vmem:[%s2 + $0xb0] sm:$0xff]
        %v499 = vld [vmem:[%s2 + $0xb8] sm:$0xff]
        %v500 = vld [vmem:[%s2 + $0xc0] sm:$0xff]
        %v501 = vld [vmem:[%s2 + $0xc8] sm:$0xff]
        %v502 = vld [vmem:[%s2 + $0xd0] sm:$0xff]
        %v503 = vld [vmem:[%s2 + $0xd8] sm:$0xff]
        %v504 = vld [vmem:[%s2 + $0xe0] sm:$0xff]
        %v505 = vld [vmem:[%s2 + $0xe8] sm:$0xff]
        %v506 = vld [vmem:[%s2 + $0xf0] sm:$0xff]
        %v507 = vld [vmem:[%s2 + $0xf8] sm:$0xff]
        %s508 = sld [smem:[#allocation2]]
        %v509 = vstv %s508
        %510 = vmatpush.msra.mxu0 %v491
        %511 = vmatpush.msra.mxu0 %v490
        %512 = vmatpush.msra.mxu0 %v489
        %513 = vmatpush.msra.mxu0 %v488
        %514 = vmatpush.msra.mxu0 %v487
        %515 = vmatpush.msra.mxu0 %v486
        %516 = vmatpush.msra.mxu0 %v485
        %517 = vmatpush.msra.mxu0 %v484
        %518 = vmatpush.msra.mxu0 %v483
        %519 = vmatpush.msra.mxu0 %v482
        %520 = vmatpush.msra.mxu0 %v481
        %521 = vmatpush.msra.mxu0 %v480
        %522 = vmatpush.msra.mxu0 %v479
        %523 = vmatpush.msra.mxu0 %v478
        %524 = vmatpush.msra.mxu0 %v477
        %525 = vmatpush.msra.mxu0 %v476
        %526 = vmatmul.f32.gmra.mxu0 %v474
        %v527 = vpop.f32.mrf.mxu0
        %v528 = vadd.f32 %v509, %v527
        %529 = vdwg.mxu0
        %530 = vmatpush.msra.mxu0 %v507
        %531 = vmatpush.msra.mxu0 %v506
        %532 = vmatpush.msra.mxu0 %v505
        %533 = vmatpush.msra.mxu0 %v504
        %534 = vmatpush.msra.mxu0 %v503
        %535 = vmatpush.msra.mxu0 %v502
        %536 = vmatpush.msra.mxu0 %v501
        %537 = vmatpush.msra.mxu0 %v500
        %538 = vmatpush.msra.mxu0 %v499
        %539 = vmatpush.msra.mxu0 %v498
        %540 = vmatpush.msra.mxu0 %v497
        %541 = vmatpush.msra.mxu0 %v496
        %542 = vmatpush.msra.mxu0 %v495
        %543 = vmatpush.msra.mxu0 %v494
        %544 = vmatpush.msra.mxu0 %v493
        %545 = vmatpush.msra.mxu0 %v492
        %546 = vmatmul.f32.gmra.mxu0 %v475
        %v547 = vpop.f32.mrf.mxu0
        %v548 = vadd.f32 %v528, %v547
        %549 = vdwg.mxu0
        %v550 = vsub.f32 0.0, %v548
        %v551 = vmul.f32 %v550, 1.442695
        %v552 = vpow.pop %v551
        %v553 = vadd.f32 %v552, 1.0
        %v554 = vrcp.pop %v553
        %v555 = vmul.f32 %v553, %v554
        %v556 = vsub.f32 1.0, %v555
        %v557 = vmul.f32 %v554, %v556
        %v558 = vadd.f32 %v554, %v557
        %vm559 = vweird.f32 %v553
        %vm560 = vweird.f32 %v554
        %vm561 = vmor %vm559, %vm560
        %v562 = vsel %vm561, %v554, %v558
        %v563 = vand.u32 2147483647, %v553
        %vm564 = vcmp.eq.f32.partialorder %v563, 8.507059e+37
        %v565 = vand.u32 %v553, 2147483648
        %v566 = vor.u32 1.1754944e-38, %v565
        %v567 = vsel %vm564, %v566, %v562
        %v568 = vmul.f32 1.0, %v567
        %v569 = vld [vmem:[%s338] sm:$0xff]
        %vm570 = vcmp.gt.f32.partialorder %v569, 0.5
        %v571 = vld [vmem:[%s342] sm:$0xff]
        %v572 = vsel %vm570, %v571, %v568
        %vm573 = vcmask 31744
        %574 = vst.msk [vmem:[%s346] sm:$0xff] %vm573, %v572
        %v575 = vld [vmem:[%s3] sm:$0xf]
        %v577 = vsel %vm573, %v572, 0
        %vm579 = vcmask 1043456
        %v581 = vsel %vm579, %v575, 0
        %583 = vmatpush.msra.mxu0 0.0
        %584 = vmatpush.msra.mxu0 0.0
        %585 = vmatpush.msra.mxu0 0.0
        %586 = vmatpush.msra.mxu0 0.0
        %587 = vmatpush.msra.mxu0 0.0
        %588 = vmatpush.msra.mxu0 0.0
        %589 = vmatpush.msra.mxu0 0.0
        %590 = vmatpush.msra.mxu0 0.0
        %591 = vmatpush.msra.mxu0 0.0
        %592 = vmatpush.msra.mxu0 0.0
        %593 = vmatpush.msra.mxu0 0.0
        %594 = vmatpush.msra.mxu0 0.0
        %595 = vmatpush.msra.mxu0 0.0
        %596 = vmatpush.msra.mxu0 0.0
        %597 = vmatpush.msra.mxu0 0.0
        %598 = vmatpush.msra.mxu0 %v581
        %599 = vmatmul.f32.gmra.mxu0 %v577
        %v600 = vpop.f32.mrf.mxu0
        %v601 = vadd.f32 0.0, %v600
        %602 = vdwg.mxu0
        %v603 = vmul.f32 %v474, %v601
        %v604 = vsub.f32 1.0, %v601
        %v605 = vmul.f32 %v475, %v604
        %v606 = vadd.f32 %v603, %v605
        %607 = vst [vmem:[%s324] sm:$0xff] %v606
        %s608 = sand.u32 %s194, 1
        %s609 = scalar_lea.sflag [#allocation4], %s608
        %s610 = sand.u32 %s194, 1
        %s611 = smul.addr %s610, 8
        %s612 = scalar_lea.vmem [#allocation3], %s611
        %p613 = scmp.lt.s32.totalorder %s24, 2
        %s614 = scalar_select %p613, %s24, 2
        %s615 = smul.addr %s614, 8
        %s616 = scalar_lea.vmem %s8, %s615
        // Predicated region
        $region49: #{tpu_custom_call.1} parent=47 // pred_check
          %p617 = pneg %p204
        $region50: #{tpu_custom_call.1} parent=47 // pred_check_branch
          %619 = sbr.rel (%p617) target = $region52
        $region51: #{tpu_custom_call.1} parent=47 // pred_region
          %621 = vsyncadd %s609, 0
          %s622 = smul.addr %s24, 8
          %s623 = scalar_lea.hbm %s7, %s622
          %s625 = sshll.u32 %s612, 4
          %s626 = int_to_ptr.vmem [resolvable:$true] %s625
          %s627 = sshll.u32 %s623, 4
          %s628 = int_to_ptr.hbm [resolvable:$true] %s627
          %630 = dma.vmem_to_hbm [thread:$0]  %s626, 128, %s628, %s609
        $region52: #{tpu_custom_call.1} parent=47 // pred_fallthru
          _
        // Predicated region
        $region53: #{tpu_custom_call.1} parent=47 // pred_check
          %p631 = pneg %p230
        $region54: #{tpu_custom_call.1} parent=47 // pred_check_branch
          %633 = sbr.rel (%p631) target = $region56
        $region55: #{tpu_custom_call.1} parent=47 // pred_region
          _
        $region56: #{tpu_custom_call.1} parent=47 // pred_fallthru
          _
      $region48: #{tpu_custom_call.1} parent=5 // pred_fallthru
        _
      %p634 = scmp.le.s32.totalorder 2, %s19
      // Predicated region
      $region57: #{tpu_custom_call.1} parent=5 // pred_check
        %p635 = pneg %p634
      $region58: #{tpu_custom_call.1} parent=5 // pred_check_branch
        %637 = sbr.rel (%p635) target = $region60
      $region59: #{tpu_custom_call.1} parent=5 // pred_region
        %s638 = ssub.s32 %s19, 2
        // Predicated region
        $region61: #{tpu_custom_call.1} parent=59 // pred_check
          %p639 = pneg %p210
        $region62: #{tpu_custom_call.1} parent=59 // pred_check_branch
          %641 = sbr.rel (%p639) target = $region64
        $region63: #{tpu_custom_call.1} parent=59 // pred_region
          %s642 = sand.u32 %s195, 1
          %s643 = scalar_lea.sflag [#allocation4], %s642
          %s644 = sand.u32 %s195, 1
          %s645 = smul.addr %s644, 8
          %s646 = scalar_lea.vmem [#allocation3], %s645
          %648 = dma.done %s643, 128
        $region64: #{tpu_custom_call.1} parent=59 // pred_fallthru
          _
        // Predicated region
        $region65: #{tpu_custom_call.1} parent=59 // pred_check
          %p649 = pneg %p236
        $region66: #{tpu_custom_call.1} parent=59 // pred_check_branch
          %651 = sbr.rel (%p649) target = $region68
        $region67: #{tpu_custom_call.1} parent=59 // pred_region
          %p652 = scmp.lt.s32.totalorder %s25, 2
          %s653 = scalar_select %p652, %s25, 2
          %s654 = smul.addr %s653, 8
          %s655 = scalar_lea.vmem %s8, %s654
        $region68: #{tpu_custom_call.1} parent=59 // pred_fallthru
          _
      $region60: #{tpu_custom_call.1} parent=5 // pred_fallthru
        _
    $region6: #{tpu_custom_call.1} parent=1 // loop_footer
      %s23 = sadd.s32 1, %s19
    $region7: #{tpu_custom_call.1} parent=1 // loop_footer_branch
      %18 = sbr.rel target = $region3
    $region8: #{tpu_custom_call.1} parent=1 // loop_exit
      _
    %656 = vsyncpa [#allocation4], 1
    %s657 = scalar_lea.sflag [#allocation4], 1
    %658 = vsyncpa %s657, 1

</llo_original>
